<compile_context>
chip_gen: v6e
topology: v6e:2x2x1
jax: 0.10.0
libtpu: 0.0.40
codegen_flags: <defaults>
</compile_context>

<pallas_src>
import functools
import math

import jax
import jax.numpy as jnp
from jax import lax
from jax.experimental import pallas as pl
from jax.experimental.pallas import tpu as pltpu


_SQRT_HALF = 1.0 / math.sqrt(2.0)


def _erf(x):
    """erf via Abramowitz & Stegun 7.1.26 (max |err| ~1.5e-7).

    Built only from abs/mul/add/div/exp/where so it is guaranteed to lower in
    Mosaic (VPU + EUP slots).
    # TODO(synk): switch to a native erf lowering if/when Mosaic exposes one;
    # the polynomial makes the transform step VPU-bound (mostly felt on v5e).
    """
    a1, a2, a3, a4, a5 = (0.254829592, -0.284496736, 1.421413741,
                          -1.453152027, 1.061405429)
    p = 0.3275911
    ax = jnp.abs(x)
    t = 1.0 / (1.0 + p * ax)
    poly = ((((a5 * t + a4) * t + a3) * t + a2) * t + a1) * t
    y = 1.0 - poly * jnp.exp(-ax * ax)
    return jnp.where(x < 0, -y, y)


def _gelu(x):
    # Exact (erf-based) GELU, matching clip4cc's ACT2FN["gelu"].
    return 0.5 * x * (1.0 + _erf(x * _SQRT_HALF))


# ---------------------------------------------------------------------------
# Fused kernel:
#   j == 0 : y_scratch = LayerNorm(gelu(x @ Wd^T + bd))      (per row tile)
#   all j  : o[i, j]   = y_scratch @ E_j^T + out_bias_j
# ---------------------------------------------------------------------------
def head_kernel(x_ref, wd_ref, bd_ref, g_ref, beta_ref, e_ref, ob_ref,
                o_ref, y_ref, *, eps):
    # ---- transform (once per row tile, at the first vocab tile) -----------
    @pl.when(pl.program_id(1) == 0)
    def _():
        x = x_ref[...]                                   # [TM, H]
        w = wd_ref[...]                                  # [H_out, H_in] (PyTorch)
        # Contract last dims of both operands -> no transpose of w needed.
        h = lax.dot_general(x, w, (((1,), (1,)), ((), ())),
                            preferred_element_type=jnp.float32)
        h = h + bd_ref[...].astype(jnp.float32)
        h = _gelu(h)
        # LayerNorm over hidden axis, f32 math, eps=1e-12, biased variance.
        mean = jnp.mean(h, axis=-1, keepdims=True)
        c = h - mean
        var = jnp.mean(c * c, axis=-1, keepdims=True)
        y = c * lax.rsqrt(var + eps)
        y = (y * g_ref[...].astype(jnp.float32)
             + beta_ref[...].astype(jnp.float32))
        y_ref[...] = y.astype(y_ref.dtype)

    # ---- decoder projection for the current (row, vocab) tile -------------
    # y: [TM, H], e: [TN, H] (embedding rows) -> contract last dims.
    acc = lax.dot_general(y_ref[...], e_ref[...], (((1,), (1,)), ((), ())),
                          preferred_element_type=jnp.float32)
    o_ref[...] = (acc + ob_ref[...].astype(jnp.float32)).astype(o_ref.dtype)


# ---------------------------------------------------------------------------
# Wrapper
# ---------------------------------------------------------------------------
def _tile(n, pref, align):
    # Full dim if it fits (always legal); otherwise an aligned tile.
    if n <= pref:
        return n
    assert pref % align == 0
    return pref


def bert_lm_prediction_head(hidden_states, params, *, eps=1e-12,
                            tm=512, tn=1024):
    """Pallas forward of BertLMPredictionHead.

    hidden_states: [B, S, H]
    params:
      dense_w [H, H], dense_b [H]   (transform.dense, PyTorch [out, in] layout)
      ln_g [H], ln_b [H]            (transform.LayerNorm weight / bias)
      decoder_w [V, H]              (tied decoder embedding weights)
      out_bias [V]                  (the separate bias Parameter)
    Returns logits [B, S, V].
    """
    B, S, H = hidden_states.shape
    V = params["decoder_w"].shape[0]
    N = B * S
    dtype = hidden_states.dtype

    x2d = hidden_states.reshape(N, H)

    tm_ = _tile(N, tm, 8)      # sublane-aligned row tile
    tn_ = _tile(V, tn, 128)    # lane-aligned vocab tile

    logits = pl.pallas_call(
        functools.partial(head_kernel, eps=eps),
        out_shape=jax.ShapeDtypeStruct((N, V), dtype),
        grid_spec=pltpu.PrefetchScalarGridSpec(
            num_scalar_prefetch=0,
            grid=(pl.cdiv(N, tm_), pl.cdiv(V, tn_)),
            in_specs=[
                # x: re-used across all vocab tiles of a row tile (block index
                # constant in j -> fetched once per row tile).
                pl.BlockSpec((tm_, H), lambda i, j: (i, 0)),
                # transform params: constant block index -> fetched once.
                pl.BlockSpec((H, H), lambda i, j: (0, 0)),
                pl.BlockSpec((1, H), lambda i, j: (0, 0)),
                pl.BlockSpec((1, H), lambda i, j: (0, 0)),
                pl.BlockSpec((1, H), lambda i, j: (0, 0)),
                # embedding rows: streamed per vocab tile.
                pl.BlockSpec((tn_, H), lambda i, j: (j, 0)),
                pl.BlockSpec((1, tn_), lambda i, j: (0, j)),
            ],
            out_specs=pl.BlockSpec((tm_, tn_), lambda i, j: (i, j)),
            scratch_shapes=[pltpu.VMEM((tm_, H), dtype)],   # y, lives per row tile
        ),
        compiler_params=pltpu.CompilerParams(
            # Vocab axis must run sequentially per row tile (scratch reuse);
            # row axis may be sharded across TensorCores (megacore).
            dimension_semantics=("parallel", "arbitrary"),
            vmem_limit_bytes=64 * 1024 * 1024,
        ),
    )(x2d,
      params["dense_w"],
      params["dense_b"].reshape(1, H),
      params["ln_g"].reshape(1, H),
      params["ln_b"].reshape(1, H),
      params["decoder_w"],
      params["out_bias"].reshape(1, V))

    return logits.reshape(B, S, V)


# ---------------------------------------------------------------------------
# Pure-JAX reference for a sanity check.
# ---------------------------------------------------------------------------
def reference(hidden_states, params, eps=1e-12):
    h = jnp.einsum("bsh,oh->bso", hidden_states, params["dense_w"],
                   precision=lax.Precision.HIGHEST) + params["dense_b"]
    h = jax.nn.gelu(h, approximate=False)
    mean = jnp.mean(h, axis=-1, keepdims=True)
    var = jnp.mean((h - mean) ** 2, axis=-1, keepdims=True)
    h = (h - mean) * lax.rsqrt(var + eps)
    h = h * params["ln_g"] + params["ln_b"]
    logits = jnp.einsum("bsh,vh->bsv", h, params["decoder_w"],
                        precision=lax.Precision.HIGHEST) + params["out_bias"]
    return logits


if __name__ == "__main__":
    # Small config consistent with the module: batch=2, seq=8, hidden=32,
    # tied-embedding vocab=96.
    B, S, H, V = 2, 8, 32, 96
    key = jax.random.PRNGKey(0)
    ks = jax.random.split(key, 7)

    x = jax.random.normal(ks[0], (B, S, H), jnp.float32)
    scale = 1.0 / math.sqrt(H)
    params = {
        "dense_w": jax.random.normal(ks[1], (H, H), jnp.float32) * scale,
        "dense_b": jax.random.normal(ks[2], (H,), jnp.float32) * 0.02,
        "ln_g": 1.0 + 0.1 * jax.random.normal(ks[3], (H,), jnp.float32),
        "ln_b": 0.1 * jax.random.normal(ks[4], (H,), jnp.float32),
        "decoder_w": jax.random.normal(ks[5], (V, H), jnp.float32) * scale,
        "out_bias": 0.02 * jax.random.normal(ks[6], (V,), jnp.float32),
    }

    out = jax.jit(lambda xx: bert_lm_prediction_head(xx, params))(x)
    jax.block_until_ready(out)

    ref = reference(x, params)
    assert out.shape == (B, S, V)
    max_err = float(jnp.max(jnp.abs(out - ref)))
    assert jnp.allclose(out, ref, atol=1e-3, rtol=1e-3), max_err

    print("KERNEL_OK")
</pallas_src>

<mosaic_0001>
module attributes {stable_mosaic.version = 11 : i64} {
  func.func @head_kernel(%arg0: i32, %arg1: i32, %arg2: memref<16x32xf32, #tpu.memory_space<vmem>>, %arg3: memref<32x32xf32, #tpu.memory_space<vmem>>, %arg4: memref<1x32xf32, #tpu.memory_space<vmem>>, %arg5: memref<1x32xf32, #tpu.memory_space<vmem>>, %arg6: memref<1x32xf32, #tpu.memory_space<vmem>>, %arg7: memref<96x32xf32, #tpu.memory_space<vmem>>, %arg8: memref<1x96xf32, #tpu.memory_space<vmem>>, %arg9: memref<16x96xf32, #tpu.memory_space<vmem>>, %arg10: memref<16x32xf32, #tpu.memory_space<vmem>>) attributes {dimension_semantics = [#tpu.dimension_semantics<parallel>, #tpu.dimension_semantics<arbitrary>], iteration_bounds = array<i64: 1, 1>, scalar_prefetch = 0 : i64, scratch_operands = 1 : i64, tpu.core_type = #tpu.core_type<tc>, window_params = [{transform_indices = @transform_0, window_bounds = array<i64: 16, 32>}, {pipeline_mode = #tpu.pipeline_mode<synchronous>, transform_indices = @transform_1, window_bounds = array<i64: 32, 32>}, {pipeline_mode = #tpu.pipeline_mode<synchronous>, transform_indices = @transform_2, window_bounds = array<i64: 1, 32>}, {pipeline_mode = #tpu.pipeline_mode<synchronous>, transform_indices = @transform_3, window_bounds = array<i64: 1, 32>}, {pipeline_mode = #tpu.pipeline_mode<synchronous>, transform_indices = @transform_4, window_bounds = array<i64: 1, 32>}, {transform_indices = @transform_5, window_bounds = array<i64: 96, 32>}, {transform_indices = @transform_6, window_bounds = array<i64: 1, 96>}, {transform_indices = @transform_7, window_bounds = array<i64: 16, 96>}]} {
    %c0_i32 = arith.constant 0 : i32
    %0 = arith.cmpi eq, %arg1, %c0_i32 : i32
    %1 = arith.extui %0 : i1 to i32
    %c0_i32_0 = arith.constant 0 : i32
    %2 = arith.cmpi ne, %1, %c0_i32_0 : i32
    scf.if %2 {
      %c0_8 = arith.constant 0 : index
      %c0_9 = arith.constant 0 : index
      %10 = vector.load %arg2[%c0_8, %c0_9] : memref<16x32xf32, #tpu.memory_space<vmem>>, vector<16x32xf32>
      %c0_10 = arith.constant 0 : index
      %c0_11 = arith.constant 0 : index
      %11 = vector.load %arg3[%c0_10, %c0_11] : memref<32x32xf32, #tpu.memory_space<vmem>>, vector<32x32xf32>
      %cst_12 = arith.constant dense<0.000000e+00> : vector<16x32xf32>
      %12 = tpu.matmul %10, %11, %cst_12 {dimension_numbers = #tpu.dot_dimension_numbers<[1], [1], [0], [0], [0, 0, 1, 0], [], []>} : vector<16x32xf32>, vector<32x32xf32>, vector<16x32xf32> -> vector<16x32xf32>
      %c0_13 = arith.constant 0 : index
      %c0_14 = arith.constant 0 : index
      %13 = vector.load %arg4[%c0_13, %c0_14] : memref<1x32xf32, #tpu.memory_space<vmem>>, vector<1x32xf32>
      %14 = vector.broadcast %13 : vector<1x32xf32> to vector<16x32xf32>
      %15 = arith.addf %12, %14 : vector<16x32xf32>
      %cst_15 = arith.constant 5.000000e-01 : f32
      %16 = vector.broadcast %cst_15 : f32 to vector<16x32xf32>
      %17 = arith.mulf %16, %15 : vector<16x32xf32>
      %cst_16 = arith.constant 0.707106769 : f32
      %18 = vector.broadcast %cst_16 : f32 to vector<16x32xf32>
      %19 = arith.mulf %15, %18 : vector<16x32xf32>
      %20 = math.absf %19 : vector<16x32xf32>
      %cst_17 = arith.constant 0.327591091 : f32
      %21 = vector.broadcast %cst_17 : f32 to vector<16x32xf32>
      %22 = arith.mulf %21, %20 : vector<16x32xf32>
      %cst_18 = arith.constant 1.000000e+00 : f32
      %23 = vector.broadcast %cst_18 : f32 to vector<16x32xf32>
      %24 = arith.addf %23, %22 : vector<16x32xf32>
      %cst_19 = arith.constant 1.000000e+00 : f32
      %25 = vector.broadcast %cst_19 : f32 to vector<16x32xf32>
      %26 = arith.divf %25, %24 : vector<16x32xf32>
      %cst_20 = arith.constant 1.06140542 : f32
      %27 = vector.broadcast %cst_20 : f32 to vector<16x32xf32>
      %28 = arith.mulf %27, %26 : vector<16x32xf32>
      %cst_21 = arith.constant -1.45315206 : f32
      %29 = vector.broadcast %cst_21 : f32 to vector<16x32xf32>
      %30 = arith.addf %28, %29 : vector<16x32xf32>
      %31 = arith.mulf %30, %26 : vector<16x32xf32>
      %cst_22 = arith.constant 1.42141378 : f32
      %32 = vector.broadcast %cst_22 : f32 to vector<16x32xf32>
      %33 = arith.addf %31, %32 : vector<16x32xf32>
      %34 = arith.mulf %33, %26 : vector<16x32xf32>
      %cst_23 = arith.constant -0.284496725 : f32
      %35 = vector.broadcast %cst_23 : f32 to vector<16x32xf32>
      %36 = arith.addf %34, %35 : vector<16x32xf32>
      %37 = arith.mulf %36, %26 : vector<16x32xf32>
      %cst_24 = arith.constant 0.254829586 : f32
      %38 = vector.broadcast %cst_24 : f32 to vector<16x32xf32>
      %39 = arith.addf %37, %38 : vector<16x32xf32>
      %40 = arith.mulf %39, %26 : vector<16x32xf32>
      %cst_25 = arith.constant 0.000000e+00 : f32
      %41 = vector.broadcast %cst_25 : f32 to vector<16x32xf32>
      %42 = arith.subf %41, %20 : vector<16x32xf32>
      %43 = arith.mulf %42, %20 : vector<16x32xf32>
      %44 = math.exp %43 : vector<16x32xf32>
      %45 = arith.mulf %40, %44 : vector<16x32xf32>
      %cst_26 = arith.constant 1.000000e+00 : f32
      %46 = vector.broadcast %cst_26 : f32 to vector<16x32xf32>
      %47 = arith.subf %46, %45 : vector<16x32xf32>
      %cst_27 = arith.constant 0.000000e+00 : f32
      %48 = vector.broadcast %cst_27 : f32 to vector<16x32xf32>
      %49 = arith.cmpf olt, %19, %48 : vector<16x32xf32>
      %cst_28 = arith.constant 0.000000e+00 : f32
      %50 = vector.broadcast %cst_28 : f32 to vector<16x32xf32>
      %51 = arith.subf %50, %47 : vector<16x32xf32>
      %52 = arith.select %49, %51, %47 : vector<16x32xi1>, vector<16x32xf32>
      %cst_29 = arith.constant 1.000000e+00 : f32
      %53 = vector.broadcast %cst_29 : f32 to vector<16x32xf32>
      %54 = arith.addf %53, %52 : vector<16x32xf32>
      %55 = arith.mulf %17, %54 : vector<16x32xf32>
      %cst_30 = arith.constant dense<0.000000e+00> : vector<16xf32>
      %56 = vector.multi_reduction <add>, %55, %cst_30 [1] : vector<16x32xf32> to vector<16xf32>
      %57 = vector.shape_cast %56 : vector<16xf32> to vector<16x1xf32>
      %cst_31 = arith.constant 3.200000e+01 : f32
      %58 = vector.broadcast %cst_31 : f32 to vector<16x1xf32>
      %59 = arith.divf %57, %58 : vector<16x1xf32>
      %60 = vector.broadcast %59 : vector<16x1xf32> to vector<16x32xf32>
      %61 = arith.subf %55, %60 : vector<16x32xf32>
      %62 = arith.mulf %61, %61 : vector<16x32xf32>
      %cst_32 = arith.constant dense<0.000000e+00> : vector<16xf32>
      %63 = vector.multi_reduction <add>, %62, %cst_32 [1] : vector<16x32xf32> to vector<16xf32>
      %64 = vector.shape_cast %63 : vector<16xf32> to vector<16x1xf32>
      %cst_33 = arith.constant 3.200000e+01 : f32
      %65 = vector.broadcast %cst_33 : f32 to vector<16x1xf32>
      %66 = arith.divf %64, %65 : vector<16x1xf32>
      %cst_34 = arith.constant 9.99999996E-13 : f32
      %67 = vector.broadcast %cst_34 : f32 to vector<16x1xf32>
      %68 = arith.addf %66, %67 : vector<16x1xf32>
      %69 = math.rsqrt %68 : vector<16x1xf32>
      %70 = vector.broadcast %69 : vector<16x1xf32> to vector<16x32xf32>
      %71 = arith.mulf %61, %70 : vector<16x32xf32>
      %c0_35 = arith.constant 0 : index
      %c0_36 = arith.constant 0 : index
      %72 = vector.load %arg5[%c0_35, %c0_36] : memref<1x32xf32, #tpu.memory_space<vmem>>, vector<1x32xf32>
      %73 = vector.broadcast %72 : vector<1x32xf32> to vector<16x32xf32>
      %74 = arith.mulf %71, %73 : vector<16x32xf32>
      %c0_37 = arith.constant 0 : index
      %c0_38 = arith.constant 0 : index
      %75 = vector.load %arg6[%c0_37, %c0_38] : memref<1x32xf32, #tpu.memory_space<vmem>>, vector<1x32xf32>
      %76 = vector.broadcast %75 : vector<1x32xf32> to vector<16x32xf32>
      %77 = arith.addf %74, %76 : vector<16x32xf32>
      %c0_39 = arith.constant 0 : index
      %c0_40 = arith.constant 0 : index
      %78 = vector.load %arg10[%c0_39, %c0_40] : memref<16x32xf32, #tpu.memory_space<vmem>>, vector<16x32xf32>
      tpu.vector_store %arg10[%c0_39, %c0_40], %77 {strides = array<i32>} : memref<16x32xf32, #tpu.memory_space<vmem>>, vector<16x32xf32>,
    } else {
    }
    %c0 = arith.constant 0 : index
    %c0_1 = arith.constant 0 : index
    %3 = vector.load %arg10[%c0, %c0_1] : memref<16x32xf32, #tpu.memory_space<vmem>>, vector<16x32xf32>
    %c0_2 = arith.constant 0 : index
    %c0_3 = arith.constant 0 : index
    %4 = vector.load %arg7[%c0_2, %c0_3] : memref<96x32xf32, #tpu.memory_space<vmem>>, vector<96x32xf32>
    %cst = arith.constant dense<0.000000e+00> : vector<16x96xf32>
    %5 = tpu.matmul %3, %4, %cst {dimension_numbers = #tpu.dot_dimension_numbers<[1], [1], [0], [0], [0, 0, 1, 0], [], []>} : vector<16x32xf32>, vector<96x32xf32>, vector<16x96xf32> -> vector<16x96xf32>
    %c0_4 = arith.constant 0 : index
    %c0_5 = arith.constant 0 : index
    %6 = vector.load %arg8[%c0_4, %c0_5] : memref<1x96xf32, #tpu.memory_space<vmem>>, vector<1x96xf32>
    %7 = vector.broadcast %6 : vector<1x96xf32> to vector<16x96xf32>
    %8 = arith.addf %5, %7 : vector<16x96xf32>
    %c0_6 = arith.constant 0 : index
    %c0_7 = arith.constant 0 : index
    %9 = vector.load %arg9[%c0_6, %c0_7] : memref<16x96xf32, #tpu.memory_space<vmem>>, vector<16x96xf32>
    tpu.vector_store %arg9[%c0_6, %c0_7], %8 {strides = array<i32>} : memref<16x96xf32, #tpu.memory_space<vmem>>, vector<16x96xf32>,
    return
  }
  func.func @transform_0(%arg0: i32, %arg1: i32) -> (i32, i32) {
    %c0_i32 = arith.constant 0 : i32
    %c0_i32_0 = arith.constant 0 : i32
    return %arg0, %c0_i32 : i32, i32
  }
  func.func @transform_1(%arg0: i32, %arg1: i32) -> (i32, i32) {
    %c0_i32 = arith.constant 0 : i32
    %c0_i32_0 = arith.constant 0 : i32
    %c0_i32_1 = arith.constant 0 : i32
    return %c0_i32, %c0_i32_0 : i32, i32
  }
  func.func @transform_2(%arg0: i32, %arg1: i32) -> (i32, i32) {
    %c0_i32 = arith.constant 0 : i32
    %c0_i32_0 = arith.constant 0 : i32
    %c0_i32_1 = arith.constant 0 : i32
    return %c0_i32, %c0_i32_0 : i32, i32
  }
  func.func @transform_3(%arg0: i32, %arg1: i32) -> (i32, i32) {
    %c0_i32 = arith.constant 0 : i32
    %c0_i32_0 = arith.constant 0 : i32
    %c0_i32_1 = arith.constant 0 : i32
    return %c0_i32, %c0_i32_0 : i32, i32
  }
  func.func @transform_4(%arg0: i32, %arg1: i32) -> (i32, i32) {
    %c0_i32 = arith.constant 0 : i32
    %c0_i32_0 = arith.constant 0 : i32
    %c0_i32_1 = arith.constant 0 : i32
    return %c0_i32, %c0_i32_0 : i32, i32
  }
  func.func @transform_5(%arg0: i32, %arg1: i32) -> (i32, i32) {
    %c0_i32 = arith.constant 0 : i32
    %c0_i32_0 = arith.constant 0 : i32
    return %arg1, %c0_i32 : i32, i32
  }
  func.func @transform_6(%arg0: i32, %arg1: i32) -> (i32, i32) {
    %c0_i32 = arith.constant 0 : i32
    %c0_i32_0 = arith.constant 0 : i32
    return %c0_i32, %arg1 : i32, i32
  }
  func.func @transform_7(%arg0: i32, %arg1: i32) -> (i32, i32) {
    %c0_i32 = arith.constant 0 : i32
    return %arg0, %arg1 : i32, i32
  }
}

</mosaic_0001>

<llo_original>
// kernel: _lambda_.1
$region0: #{_lambda_.1}
  #allocation0 [shape = 'u32[]', space=smem, size = 0x4, offset = 0x4, fixed_abs, tag = 'smem constant byte address 0x4 - core index']
  #allocation1 [shape = 'u32[144,128]{1,0:T(1,128)}', space=vmem, size = 0x12000, scoped, tag = 'internal scratch']
  #allocation2 [shape = 'f32[16,32]{1,0:T(8,128)}', space=vmem, size = 0x2000, scoped, tag = 'scratch operand']
  %s0 = inlined_call_operand.hbm [shape: f32[16,32], index: 0, kind: input, shape index: {}]
  %s1 = inlined_call_operand.hbm [shape: f32[32,32], index: 1, kind: input, shape index: {}]
  %s2 = inlined_call_operand.vmem [shape: f32[1,32], index: 2, kind: input, shape index: {}]
  %s3 = inlined_call_operand.vmem [shape: f32[1,32], index: 3, kind: input, shape index: {}]
  %s4 = inlined_call_operand.vmem [shape: f32[1,32], index: 4, kind: input, shape index: {}]
  %s5 = inlined_call_operand.hbm [shape: f32[96,32], index: 5, kind: input, shape index: {}]
  %s6 = inlined_call_operand.hbm [shape: f32[1,96], index: 6, kind: input, shape index: {}]
  %s7 = inlined_call_operand.hbm [shape: f32[16,96], index: 7, kind: output, shape index: {}]
  %s8 = sld [smem:[#allocation0]]
  $region58: #{_lambda_.1} parent=0
    _
  %s10 = ssub.s32 1, %s8
  %s11 = scalar_select 0, %s10, %s8
  $region1: #{_lambda_.1} parent=0
    #allocation3 [shape = 'u8[8192]{0}', space=vmem, size = 0x2000, scoped, tag = 'input window, operand 0, single buffered']
    #allocation4 [shape = 's32[1]{0}', space=sflag, size = 0x4, scoped, tag = 'scoped memory for _lambda_.1']
    #allocation5 [shape = 's32[1]{0}', space=sflag, size = 0x4, scoped, tag = 'scoped memory for _lambda_.1']
    #allocation6 [shape = 'u8[16384]{0}', space=vmem, size = 0x4000, scoped, tag = 'input window, operand 1, single buffered']
    #allocation7 [shape = 's32[1]{0}', space=sflag, size = 0x4, scoped, tag = 'scoped memory for _lambda_.1']
    #allocation8 [shape = 'u8[49152]{0}', space=vmem, size = 0xc000, scoped, tag = 'input window, operand 5, single buffered']
    #allocation9 [shape = 'u8[512]{0}', space=vmem, size = 0x400, scoped, tag = 'input window, operand 6, single buffered']
    #allocation10 [shape = 's32[1]{0}', space=sflag, size = 0x4, scoped, tag = 'scoped memory for _lambda_.1']
    #allocation11 [shape = 'u8[8192]{0}', space=vmem, size = 0x2000, scoped, tag = 'output window, operand 0, single buffered']
    %12 = vsyncpa [#allocation4], 0
    %13 = vsyncpa [#allocation7], 0
    %14 = vsyncpa [#allocation10], 0
    %15 = vsyncpa [#allocation5], 0
    // Predicated region
    $region2: #{_lambda_.1} parent=1 // pred_check
      _
    $region3: #{_lambda_.1} parent=1 // pred_check_branch
      %17 = sbr.rel (0) target = $region5
    $region4: #{_lambda_.1} parent=1 // pred_region
      %s19 = ssub.s32 256, 256
      %20 = vsyncadd [#allocation4], %s19
      %s21 = sshll.u32 [#allocation3], 4
      %s22 = int_to_ptr.vmem [resolvable:$true] %s21
      %27 = dma.hbm_to_vmem [thread:$0]  %s0, 256, %s22, [#allocation4], 128, 128, 8
    $region5: #{_lambda_.1} parent=1 // pred_fallthru
      _
    // Predicated region
    $region6: #{_lambda_.1} parent=1 // pred_check
      _
    $region7: #{_lambda_.1} parent=1 // pred_check_branch
      %29 = sbr.rel (0) target = $region9
    $region8: #{_lambda_.1} parent=1 // pred_region
      %s31 = ssub.s32 512, 512
      %32 = vsyncadd [#allocation7], %s31
      %s33 = sshll.u32 [#allocation6], 4
      %s34 = int_to_ptr.vmem [resolvable:$true] %s33
      %39 = dma.hbm_to_vmem [thread:$0]  %s1, 512, %s34, [#allocation7], 128, 128, 8
    $region9: #{_lambda_.1} parent=1 // pred_fallthru
      _
    // Predicated region
    $region10: #{_lambda_.1} parent=1 // pred_check
      _
    $region11: #{_lambda_.1} parent=1 // pred_check_branch
      %41 = sbr.rel (0) target = $region13
    $region12: #{_lambda_.1} parent=1 // pred_region
      _
    $region13: #{_lambda_.1} parent=1 // pred_fallthru
      _
    // Predicated region
    $region14: #{_lambda_.1} parent=1 // pred_check
      _
    $region15: #{_lambda_.1} parent=1 // pred_check_branch
      %43 = sbr.rel (0) target = $region17
    $region16: #{_lambda_.1} parent=1 // pred_region
      _
    $region17: #{_lambda_.1} parent=1 // pred_fallthru
      _
    // Predicated region
    $region18: #{_lambda_.1} parent=1 // pred_check
      _
    $region19: #{_lambda_.1} parent=1 // pred_check_branch
      %45 = sbr.rel (0) target = $region21
    $region20: #{_lambda_.1} parent=1 // pred_region
      _
    $region21: #{_lambda_.1} parent=1 // pred_fallthru
      _
    // Predicated region
    $region22: #{_lambda_.1} parent=1 // pred_check
      _
    $region23: #{_lambda_.1} parent=1 // pred_check_branch
      %47 = sbr.rel (0) target = $region25
    $region24: #{_lambda_.1} parent=1 // pred_region
      %s49 = ssub.s32 1536, 1536
      %50 = vsyncadd [#allocation7], %s49
      %s51 = sshll.u32 [#allocation8], 4
      %s52 = int_to_ptr.vmem [resolvable:$true] %s51
      %57 = dma.hbm_to_vmem [thread:$0]  %s5, 1536, %s52, [#allocation7], 128, 128, 8
    $region25: #{_lambda_.1} parent=1 // pred_fallthru
      _
    // Predicated region
    $region26: #{_lambda_.1} parent=1 // pred_check
      _
    $region27: #{_lambda_.1} parent=1 // pred_check_branch
      %59 = sbr.rel (0) target = $region29
    $region28: #{_lambda_.1} parent=1 // pred_region
      %s61 = ssub.s32 16, 16
      %62 = vsyncadd [#allocation10], %s61
      %s64 = sshll.u32 [#allocation9], 4
      %s65 = int_to_ptr.vmem [resolvable:$true] %s64
      %67 = dma.hbm_to_vmem [thread:$0]  %s6, 16, %s65, [#allocation10]
    $region29: #{_lambda_.1} parent=1 // pred_fallthru
      _
    // Predicated region
    $region30: #{_lambda_.1} parent=1 // pred_check
      _
    $region31: #{_lambda_.1} parent=1 // pred_check_branch
      %69 = sbr.rel (0) target = $region33
    $region32: #{_lambda_.1} parent=1 // pred_region
      %70 = dma.done [#allocation4], 256
    $region33: #{_lambda_.1} parent=1 // pred_fallthru
      _
    // Predicated region
    $region34: #{_lambda_.1} parent=1 // pred_check
      _
    $region35: #{_lambda_.1} parent=1 // pred_check_branch
      %72 = sbr.rel (0) target = $region37
    $region36: #{_lambda_.1} parent=1 // pred_region
      %73 = dma.done [#allocation7], 512
    $region37: #{_lambda_.1} parent=1 // pred_fallthru
      _
    // Predicated region
    $region38: #{_lambda_.1} parent=1 // pred_check
      _
    $region39: #{_lambda_.1} parent=1 // pred_check_branch
      %75 = sbr.rel (0) target = $region41
    $region40: #{_lambda_.1} parent=1 // pred_region
      %76 = dma.done [#allocation7], 1536
    $region41: #{_lambda_.1} parent=1 // pred_fallthru
      _
    // Predicated region
    $region42: #{_lambda_.1} parent=1 // pred_check
      _
    $region43: #{_lambda_.1} parent=1 // pred_check_branch
      %78 = sbr.rel (0) target = $region45
    $region44: #{_lambda_.1} parent=1 // pred_region
      %79 = dma.done [#allocation10], 16
    $region45: #{_lambda_.1} parent=1 // pred_fallthru
      _
    %p80 = scmp.eq.s32.totalorder 0, 0
    // Predicated region
    $region46: #{_lambda_.1} parent=1 // pred_check
      %p81 = pneg %p80
    $region47: #{_lambda_.1} parent=1 // pred_check_branch
      %83 = sbr.rel (%p81) target = $region49
    $region48: #{_lambda_.1} parent=1 // pred_region
      %v84 = vld [vmem:[#allocation3] sm:$0xff]
      %v85 = vld [vmem:[#allocation3 + $0x8] sm:$0xff]
      %v86 = vld [vmem:[#allocation6] sm:$0xff]
      %v87 = vld [vmem:[#allocation6 + $0x8] sm:$0xff]
      %v88 = vld [vmem:[#allocation6 + $0x10] sm:$0xff]
      %v89 = vld [vmem:[#allocation6 + $0x18] sm:$0xff]
      %v90 = vld [vmem:[%s2] sm:$0x1]
      %v92 = vlaneseq
      %v93 = vshrl.u32 %v92, 7
      %v94 = vsub.s32 0, %v93
      %v95 = vrot.slane %v90, %v94
      %vm97 = vcmask 261120
      %v99 = vsel %vm97, %v84, 0
      %v102 = vsel %vm97, %v85, 0
      %v105 = vsel %vm97, %v86, 0
      %v108 = vsel %vm97, %v87, 0
      %v111 = vsel %vm97, %v88, 0
      %v114 = vsel %vm97, %v89, 0
      %116 = vmatprep.subr.mxu0 0.0
      %117 = vmatpush1.xpose.msra.mxu0 0.0
      %118 = vmatprep.subr.mxu0 0.0
      %119 = vmatpush1.xpose.msra.mxu0 0.0
      %120 = vmatprep.subr.mxu0 0.0
      %121 = vmatpush1.xpose.msra.mxu0 0.0
      %122 = vmatprep.subr.mxu0 0.0
      %123 = vmatpush1.xpose.msra.mxu0 0.0
      %124 = vmatprep.subr.mxu0 0.0
      %125 = vmatpush1.xpose.msra.mxu0 0.0
      %126 = vmatprep.subr.mxu0 0.0
      %127 = vmatpush1.xpose.msra.mxu0 0.0
      %128 = vmatprep.subr.mxu0 0.0
      %129 = vmatpush1.xpose.msra.mxu0 0.0
      %130 = vmatprep.subr.mxu0 0.0
      %131 = vmatpush1.xpose.msra.mxu0 0.0
      %132 = vmatprep.subr.mxu0 0.0
      %133 = vmatpush1.xpose.msra.mxu0 0.0
      %134 = vmatprep.subr.mxu0 0.0
      %135 = vmatpush1.xpose.msra.mxu0 0.0
      %136 = vmatprep.subr.mxu0 0.0
      %137 = vmatpush1.xpose.msra.mxu0 0.0
      %138 = vmatprep.subr.mxu0 0.0
      %139 = vmatpush1.xpose.msra.mxu0 0.0
      %140 = vmatprep.subr.mxu0 0.0
      %141 = vmatpush1.xpose.msra.mxu0 %v114
      %142 = vmatprep.subr.mxu0 0.0
      %143 = vmatpush1.xpose.msra.mxu0 %v111
      %144 = vmatprep.subr.mxu0 0.0
      %145 = vmatpush1.xpose.msra.mxu0 %v108
      %146 = vmatprep.subr.mxu0 0.0
      %147 = vmatpush1.xpose.msra.mxu0 %v105
      %148 = vmatprep.subr.mxu0 0.0
      %149 = vmatpush2.xpose.msra.mxu0 0.0
      %150 = vmatprep.subr.mxu0 0.0
      %151 = vmatpush2.xpose.msra.mxu0 0.0
      %152 = vmatprep.subr.mxu0 0.0
      %153 = vmatpush2.xpose.msra.mxu0 0.0
      %154 = vmatprep.subr.mxu0 0.0
      %155 = vmatpush2.xpose.msra.mxu0 0.0
      %156 = vmatprep.subr.mxu0 0.0
      %157 = vmatpush2.xpose.msra.mxu0 0.0
      %158 = vmatprep.subr.mxu0 0.0
      %159 = vmatpush2.xpose.msra.mxu0 0.0
      %160 = vmatprep.subr.mxu0 0.0
      %161 = vmatpush2.xpose.msra.mxu0 0.0
      %162 = vmatprep.subr.mxu0 0.0
      %163 = vmatpush2.xpose.msra.mxu0 0.0
      %164 = vmatprep.subr.mxu0 0.0
      %165 = vmatpush2.xpose.msra.mxu0 0.0
      %166 = vmatprep.subr.mxu0 0.0
      %167 = vmatpush2.xpose.msra.mxu0 0.0
      %168 = vmatprep.subr.mxu0 0.0
      %169 = vmatpush2.xpose.msra.mxu0 0.0
      %170 = vmatprep.subr.mxu0 0.0
      %171 = vmatpush2.xpose.msra.mxu0 0.0
      %172 = vmatprep.subr.mxu0 0.0
      %173 = vmatpush2.xpose.msra.mxu0 0.0
      %174 = vmatprep.subr.mxu0 0.0
      %175 = vmatpush2.xpose.msra.mxu0 0.0
      %176 = vmatprep.subr.mxu0 0.0
      %177 = vmatpush2.xpose.msra.mxu0 0.0
      %178 = vmatprep.subr.mxu0 0.0
      %179 = vmatpush2.xpose.msra.mxu0 0.0
      %180 = vmatprep.mubr.f32.mxu0 0.0
      %181 = vmatmul.mubr.f32.gmra.mxu0 %v99
      %v182 = vpop.f32.mrf.mxu0
      %v183 = vadd.f32 %v95, %v182
      %v184 = vpop.f32.mrf.mxu0
      %185 = vmatprep.mubr.f32.mxu0 0.0
      %186 = vmatmul.mubr.f32.gmra.mxu0 %v102
      %v187 = vpop.f32.mrf.mxu0
      %v188 = vadd.f32 %v95, %v187
      %v189 = vpop.f32.mrf.mxu0
      %190 = vdwg.mxu0
      %v191 = vmul.f32 %v183, 0.5
      %v192 = vmul.f32 %v188, 0.5
      %v193 = vmul.f32 %v183, 0.70710677
      %v194 = vmul.f32 %v188, 0.70710677
      %v195 = vand.u32 2147483647, %v193
      %v196 = vand.u32 2147483647, %v194
      %v197 = vmul.f32 %v195, 0.3275911
      %v198 = vmul.f32 %v196, 0.3275911
      %v199 = vadd.f32 %v197, 1.0
      %v200 = vadd.f32 %v198, 1.0
      %v201 = vrcp.pop %v199
      %v202 = vmul.f32 1.0, %v201
      %v203 = vrcp.pop %v200
      %v204 = vmul.f32 1.0, %v203
      %v205 = vmul.f32 %v202, 1.0614054
      %v206 = vmul.f32 %v204, 1.0614054
      %v207 = vadd.f32 %v205, -1.4531521
      %v208 = vadd.f32 %v206, -1.4531521
      %v209 = vmul.f32 %v207, %v202
      %v210 = vmul.f32 %v208, %v204
      %v211 = vadd.f32 %v209, 1.4214138
      %v212 = vadd.f32 %v210, 1.4214138
      %v213 = vmul.f32 %v211, %v202
      %v214 = vmul.f32 %v212, %v204
      %v215 = vadd.f32 %v213, -0.28449672
      %v216 = vadd.f32 %v214, -0.28449672
      %v217 = vmul.f32 %v215, %v202
      %v218 = vmul.f32 %v216, %v204
      %v219 = vadd.f32 %v217, 0.2548296
      %v220 = vadd.f32 %v218, 0.2548296
      %v221 = vmul.f32 %v219, %v202
      %v222 = vmul.f32 %v220, %v204
      %v223 = vsub.f32 0.0, %v195
      %v224 = vsub.f32 0.0, %v196
      %v225 = vmul.f32 %v223, %v195
      %v226 = vmul.f32 %v224, %v196
      %v227 = vmul.f32 %v225, 1.442695
      %v228 = vpow.pop %v227
      %v229 = vmul.f32 %v226, 1.442695
      %v230 = vpow.pop %v229
      %v231 = vmul.f32 %v221, %v228
      %v232 = vmul.f32 %v222, %v230
      %v233 = vsub.f32 1.0, %v231
      %v234 = vsub.f32 1.0, %v232
      %vm235 = vcmp.lt.f32.partialorder %v193, 0.0
      %vm236 = vcmp.lt.f32.partialorder %v194, 0.0
      %v237 = vsub.f32 0.0, %v233
      %v238 = vsub.f32 0.0, %v234
      %v239 = vsel %vm235, %v237, %v233
      %v240 = vsel %vm236, %v238, %v234
      %v241 = vadd.f32 %v239, 1.0
      %v242 = vadd.f32 %v240, 1.0
      %v243 = vmul.f32 %v191, %v241
      %v244 = vmul.f32 %v192, %v242
      %v245 = vsel %vm97, %v243, 0.0
      %246 = vadd.xlane.f32.xlu0 %v245
      %v247 = vpop.xlane.xlu0 %246
      %v248 = vsel %vm97, %v244, 0.0
      %249 = vadd.xlane.f32.xlu0 %v248
      %v250 = vpop.xlane.xlu0 %249
      %v251 = vrcp.pop 32.0
      %v252 = vmul.f32 %v247, %v251
      %v253 = vmul.f32 %v250, %v251
      %v254 = vsub.f32 %v243, %v252
      %v255 = vsub.f32 %v244, %v253
      %v256 = vmul.f32 %v254, %v254
      %v257 = vmul.f32 %v255, %v255
      %v258 = vsel %vm97, %v256, 0.0
      %259 = vadd.xlane.f32.xlu0 %v258
      %v260 = vpop.xlane.xlu0 %259
      %v261 = vsel %vm97, %v257, 0.0
      %262 = vadd.xlane.f32.xlu0 %v261
      %v263 = vpop.xlane.xlu0 %262
      %v264 = vmul.f32 %v260, %v251
      %v265 = vmul.f32 %v263, %v251
      %v266 = vadd.f32 %v264, 1e-12
      %v267 = vadd.f32 %v265, 1e-12
      %v268 = vrsqrt.pop %v266
      %v269 = vrsqrt.pop %v267
      %v270 = vmul.f32 %v254, %v268
      %v271 = vmul.f32 %v255, %v269
      %v272 = vld [vmem:[%s3] sm:$0x1]
      %v274 = vlaneseq
      %v275 = vshrl.u32 %v274, 7
      %v276 = vsub.s32 0, %v275
      %v277 = vrot.slane %v272, %v276
      %v279 = vmul.f32 %v270, %v277
      %v280 = vmul.f32 %v271, %v277
      %v281 = vld [vmem:[%s4] sm:$0x1]
      %v283 = vlaneseq
      %v284 = vshrl.u32 %v283, 7
      %v285 = vsub.s32 0, %v284
      %v286 = vrot.slane %v281, %v285
      %v288 = vadd.f32 %v279, %v286
      %v289 = vadd.f32 %v280, %v286
      %290 = vst.msk [vmem:[#allocation2] sm:$0xff] %vm97, %v288
      %291 = vst.msk [vmem:[#allocation2 + $0x8] sm:$0xff] %vm97, %v289
    $region49: #{_lambda_.1} parent=1 // pred_fallthru
      _
    %v292 = vld [vmem:[#allocation2] sm:$0xff]
    %v293 = vld [vmem:[#allocation2 + $0x8] sm:$0xff]
    %v294 = vld [vmem:[#allocation8] sm:$0xff]
    %v295 = vld [vmem:[#allocation8 + $0x8] sm:$0xff]
    %v296 = vld [vmem:[#allocation8 + $0x10] sm:$0xff]
    %v297 = vld [vmem:[#allocation8 + $0x18] sm:$0xff]
    %v298 = vld [vmem:[#allocation8 + $0x20] sm:$0xff]
    %v299 = vld [vmem:[#allocation8 + $0x28] sm:$0xff]
    %v300 = vld [vmem:[#allocation8 + $0x30] sm:$0xff]
    %v301 = vld [vmem:[#allocation8 + $0x38] sm:$0xff]
    %v302 = vld [vmem:[#allocation8 + $0x40] sm:$0xff]
    %v303 = vld [vmem:[#allocation8 + $0x48] sm:$0xff]
    %v304 = vld [vmem:[#allocation8 + $0x50] sm:$0xff]
    %v305 = vld [vmem:[#allocation8 + $0x58] sm:$0xff]
    %v306 = vld [vmem:[#allocation9] sm:$0x1]
    %v308 = vlaneseq
    %v309 = vshrl.u32 %v308, 7
    %v310 = vsub.s32 0, %v309
    %v311 = vrot.slane %v306, %v310
    %vm313 = vcmask 261120
    %v315 = vsel %vm313, %v292, 0
    %v318 = vsel %vm313, %v293, 0
    %v321 = vsel %vm313, %v294, 0
    %v324 = vsel %vm313, %v295, 0
    %v327 = vsel %vm313, %v296, 0
    %v330 = vsel %vm313, %v297, 0
    %v333 = vsel %vm313, %v298, 0
    %v336 = vsel %vm313, %v299, 0
    %v339 = vsel %vm313, %v300, 0
    %v342 = vsel %vm313, %v301, 0
    %v345 = vsel %vm313, %v302, 0
    %v348 = vsel %vm313, %v303, 0
    %v351 = vsel %vm313, %v304, 0
    %v354 = vsel %vm313, %v305, 0
    %356 = vmatprep.subr.mxu0 0.0
    %357 = vmatpush1.xpose.msra.mxu0 0.0
    %358 = vmatprep.subr.mxu0 0.0
    %359 = vmatpush1.xpose.msra.mxu0 0.0
    %360 = vmatprep.subr.mxu0 0.0
    %361 = vmatpush1.xpose.msra.mxu0 0.0
    %362 = vmatprep.subr.mxu0 0.0
    %363 = vmatpush1.xpose.msra.mxu0 0.0
    %364 = vmatprep.subr.mxu0 0.0
    %365 = vmatpush1.xpose.msra.mxu0 %v354
    %366 = vmatprep.subr.mxu0 0.0
    %367 = vmatpush1.xpose.msra.mxu0 %v351
    %368 = vmatprep.subr.mxu0 0.0
    %369 = vmatpush1.xpose.msra.mxu0 %v348
    %370 = vmatprep.subr.mxu0 0.0
    %371 = vmatpush1.xpose.msra.mxu0 %v345
    %372 = vmatprep.subr.mxu0 0.0
    %373 = vmatpush1.xpose.msra.mxu0 %v342
    %374 = vmatprep.subr.mxu0 0.0
    %375 = vmatpush1.xpose.msra.mxu0 %v339
    %376 = vmatprep.subr.mxu0 0.0
    %377 = vmatpush1.xpose.msra.mxu0 %v336
    %378 = vmatprep.subr.mxu0 0.0
    %379 = vmatpush1.xpose.msra.mxu0 %v333
    %380 = vmatprep.subr.mxu0 0.0
    %381 = vmatpush1.xpose.msra.mxu0 %v330
    %382 = vmatprep.subr.mxu0 0.0
    %383 = vmatpush1.xpose.msra.mxu0 %v327
    %384 = vmatprep.subr.mxu0 0.0
    %385 = vmatpush1.xpose.msra.mxu0 %v324
    %386 = vmatprep.subr.mxu0 0.0
    %387 = vmatpush1.xpose.msra.mxu0 %v321
    %388 = vmatprep.subr.mxu0 0.0
    %389 = vmatpush2.xpose.msra.mxu0 0.0
    %390 = vmatprep.subr.mxu0 0.0
    %391 = vmatpush2.xpose.msra.mxu0 0.0
    %392 = vmatprep.subr.mxu0 0.0
    %393 = vmatpush2.xpose.msra.mxu0 0.0
    %394 = vmatprep.subr.mxu0 0.0
    %395 = vmatpush2.xpose.msra.mxu0 0.0
    %396 = vmatprep.subr.mxu0 0.0
    %397 = vmatpush2.xpose.msra.mxu0 0.0
    %398 = vmatprep.subr.mxu0 0.0
    %399 = vmatpush2.xpose.msra.mxu0 0.0
    %400 = vmatprep.subr.mxu0 0.0
    %401 = vmatpush2.xpose.msra.mxu0 0.0
    %402 = vmatprep.subr.mxu0 0.0
    %403 = vmatpush2.xpose.msra.mxu0 0.0
    %404 = vmatprep.subr.mxu0 0.0
    %405 = vmatpush2.xpose.msra.mxu0 0.0
    %406 = vmatprep.subr.mxu0 0.0
    %407 = vmatpush2.xpose.msra.mxu0 0.0
    %408 = vmatprep.subr.mxu0 0.0
    %409 = vmatpush2.xpose.msra.mxu0 0.0
    %410 = vmatprep.subr.mxu0 0.0
    %411 = vmatpush2.xpose.msra.mxu0 0.0
    %412 = vmatprep.subr.mxu0 0.0
    %413 = vmatpush2.xpose.msra.mxu0 0.0
    %414 = vmatprep.subr.mxu0 0.0
    %415 = vmatpush2.xpose.msra.mxu0 0.0
    %416 = vmatprep.subr.mxu0 0.0
    %417 = vmatpush2.xpose.msra.mxu0 0.0
    %418 = vmatprep.subr.mxu0 0.0
    %419 = vmatpush2.xpose.msra.mxu0 0.0
    %420 = vmatprep.mubr.f32.mxu0 0.0
    %421 = vmatmul.mubr.f32.gmra.mxu0 %v315
    %v422 = vpop.f32.mrf.mxu0
    %v423 = vadd.f32 %v311, %v422
    %v424 = vpop.f32.mrf.mxu0
    %425 = vmatprep.mubr.f32.mxu0 0.0
    %426 = vmatmul.mubr.f32.gmra.mxu0 %v318
    %v427 = vpop.f32.mrf.mxu0
    %v428 = vadd.f32 %v311, %v427
    %v429 = vpop.f32.mrf.mxu0
    %430 = vdwg.mxu0
    %vm431 = vcmask 785408
    %432 = vst.msk [vmem:[#allocation11] sm:$0xff] %vm431, %v423
    %433 = vst.msk [vmem:[#allocation11 + $0x8] sm:$0xff] %vm431, %v428
    // Predicated region
    $region50: #{_lambda_.1} parent=1 // pred_check
      _
    $region51: #{_lambda_.1} parent=1 // pred_check_branch
      %435 = sbr.rel (0) target = $region53
    $region52: #{_lambda_.1} parent=1 // pred_region
      %s437 = ssub.s32 256, 256
      %438 = vsyncadd [#allocation5], %s437
      %s439 = sshll.u32 [#allocation11], 4
      %s440 = int_to_ptr.vmem [resolvable:$true] %s439
      %445 = dma.vmem_to_hbm [thread:$0]  %s440, 256, %s7, [#allocation5], 128, 128, 8
    $region53: #{_lambda_.1} parent=1 // pred_fallthru
      _
    // Predicated region
    $region54: #{_lambda_.1} parent=1 // pred_check
      _
    $region55: #{_lambda_.1} parent=1 // pred_check_branch
      %447 = sbr.rel (0) target = $region57
    $region56: #{_lambda_.1} parent=1 // pred_region
      %448 = dma.done [#allocation5], 256
    $region57: #{_lambda_.1} parent=1 // pred_fallthru
      _
    %449 = vsyncpa [#allocation4], 1
    %450 = vsyncpa [#allocation7], 1
    %451 = vsyncpa [#allocation10], 1
    %452 = vsyncpa [#allocation5], 1

</llo_original>
